<compile_context>
chip_gen: v5e
topology: v5e:2x2
jax: 0.10.0
libtpu: 0.0.40
codegen_flags: <defaults>
</compile_context>

<pallas_src>
import jax
import jax.numpy as jnp
from jax.experimental import pallas as pl
from jax.experimental.pallas import tpu as pltpu

EPS = 1e-5
_HIGHEST = jax.lax.Precision.HIGHEST


def _round_up(x, m):
    return (x + m - 1) // m * m


def _fold_affine(gamma, beta, w, wb):
    """Fold the LayerNorm affine into the linear layer (f32, O(D^2) per call)."""
    d = w.shape[0]
    gamma_f = jnp.asarray(gamma, jnp.float32).reshape(d)
    beta_f = jnp.asarray(beta, jnp.float32).reshape(d)
    w_f = jnp.asarray(w, jnp.float32).reshape(d, d)
    wb_f = jnp.asarray(wb, jnp.float32).reshape(d)
    w_fold = gamma_f[:, None] * w_f                              # (D, D)
    b_fold = jnp.dot(beta_f, w_f, precision=_HIGHEST) + wb_f     # (D,)
    return w_fold, b_fold.reshape(1, d)


def prenorm_kernel(x_ref, w_ref, b_ref, o_ref):
    # x_ref: (tm, D) tile of flattened tokens. Rows past R (tail tile only) are
    #        undefined; LayerNorm is row-wise so they never touch valid rows, and
    #        Pallas masks their stores.
    # w_ref: (D, D) folded weight, resident across the grid, already in MXU dtype.
    # b_ref: (1, D) folded bias, f32.
    x = x_ref[...].astype(jnp.float32)
    mean = jnp.mean(x, axis=-1, keepdims=True)
    centered = x - mean
    var = jnp.mean(centered * centered, axis=-1, keepdims=True)
    xn = centered * jax.lax.rsqrt(var + EPS)             # f32 LayerNorm statistics
    out = jnp.dot(xn.astype(w_ref.dtype), w_ref[...],    # low-precision MXU, f32 accum
                  preferred_element_type=jnp.float32) + b_ref[...]
    o_ref[...] = out.astype(o_ref.dtype)


def prenorm(x, gamma, beta, w, wb, *, tm=1024, mxu_dtype=jnp.bfloat16):
    B, N, D = x.shape
    R = B * N
    out_dtype = x.dtype

    w_fold, b_fold = _fold_affine(gamma, beta, w, wb)
    w_fold = w_fold.astype(mxu_dtype)                    # cast once, outside the kernel

    x2 = x.reshape(R, D)                                 # view-only, no HBM copy

    # Row tile: dtype-native sublane granularity; clamp so the grid has >= 2 steps
    # whenever R permits (v7x has 2 TCs and shards the "parallel" axis across them).
    sub = {1: 32, 2: 16}.get(jnp.dtype(x.dtype).itemsize, 8)
    tm_cap = max(sub, _round_up(pl.cdiv(R, 2), sub))
    tm_eff = max(sub, min(_round_up(tm, sub), tm_cap))
    grid = pl.cdiv(R, tm_eff)                            # tail block masked by Pallas

    def _call(single_buffer_consts):
        const_kw = {"pipeline_mode": pl.Buffered(1)} if single_buffer_consts else {}
        x_bytes = jnp.dtype(x2.dtype).itemsize
        o_bytes = jnp.dtype(out_dtype).itemsize
        w_bytes = jnp.dtype(mxu_dtype).itemsize
        nconst = 1 if single_buffer_consts else 2
        vmem_need = (
            2 * tm_eff * D * (x_bytes + o_bytes)          # double-buffered x / out tiles
            + nconst * (D * D * w_bytes + D * 4)          # resident folded weight + bias
            + 4 * tm_eff * D * 4                          # f32 temps: x, centered, xn, acc
        )
        vmem_limit = int(min(max(vmem_need + (4 << 20), 32 << 20), 48 << 20))
        return pl.pallas_call(
            prenorm_kernel,
            out_shape=jax.ShapeDtypeStruct((R, D), out_dtype),
            grid_spec=pltpu.PrefetchScalarGridSpec(
                num_scalar_prefetch=0,
                grid=(grid,),
                in_specs=[
                    pl.BlockSpec((tm_eff, D), lambda i: (i, 0)),          # x tile
                    pl.BlockSpec((D, D), lambda i: (0, 0), **const_kw),   # folded weight
                    pl.BlockSpec((1, D), lambda i: (0, 0), **const_kw),   # folded bias
                ],
                out_specs=pl.BlockSpec((tm_eff, D), lambda i: (i, 0)),
            ),
            compiler_params=pltpu.CompilerParams(
                dimension_semantics=("parallel",),
                vmem_limit_bytes=vmem_limit),
        )(x2, w_fold, b_fold)

    try:
        out2 = _call(True)      # single-buffered resident constants (v7x VMEM saver)
    except Exception:
        out2 = _call(False)     # fallback: plain (double-buffered) constant specs
    return out2.reshape(B, N, D)


# ------------------------------ references -----------------------------------

def prenorm_ref(x, gamma, beta, w, wb):
    """Pure-f32 reference with the module's exact association: fn(LayerNorm(x))."""
    xf = x.astype(jnp.float32)
    mean = jnp.mean(xf, axis=-1, keepdims=True)
    var = jnp.mean((xf - mean) ** 2, axis=-1, keepdims=True)
    xn = (xf - mean) * jax.lax.rsqrt(var + EPS)
    y = (xn * jnp.asarray(gamma, jnp.float32).reshape(-1)
         + jnp.asarray(beta, jnp.float32).reshape(-1))
    return (jnp.dot(y, jnp.asarray(w, jnp.float32), precision=_HIGHEST)
            + jnp.asarray(wb, jnp.float32).reshape(-1))


def prenorm_ref_folded(x, gamma, beta, w, wb, mxu_dtype):
    """Reference mirroring the kernel's math (fold + low-precision MXU operands)."""
    w_fold, b_fold = _fold_affine(gamma, beta, w, wb)
    xf = x.astype(jnp.float32)
    mean = jnp.mean(xf, axis=-1, keepdims=True)
    var = jnp.mean((xf - mean) ** 2, axis=-1, keepdims=True)
    xn = (xf - mean) * jax.lax.rsqrt(var + EPS)
    xn_q = xn.astype(mxu_dtype).astype(jnp.float32)
    w_q = w_fold.astype(mxu_dtype).astype(jnp.float32)
    out = jnp.dot(xn_q, w_q, precision=_HIGHEST) + b_fold
    return out.astype(x.dtype)


if __name__ == "__main__":
    key = jax.random.PRNGKey(0)
    D = 128
    kg, kb, kw, kwb, kx1, kx2 = jax.random.split(key, 6)

    # LayerNorm params (PyTorch defaults would be ones/zeros; perturb for a
    # non-trivial but deterministic test).
    gamma = (1.0 + 0.1 * jax.random.normal(kg, (D,))).astype(jnp.float32)
    beta = (0.1 * jax.random.normal(kb, (D,))).astype(jnp.float32)
    # fn := Linear(D, D)
    w = (jax.random.normal(kw, (D, D)) / jnp.sqrt(D)).astype(jnp.float32)
    wb = (0.1 * jax.random.normal(kwb, (D,))).astype(jnp.float32)

    # --- Case A: f32 end-to-end, odd token count (exercises the masked tail block).
    B, N = 2, 66
    x = jax.random.normal(kx1, (B, N, D), dtype=jnp.float32)
    out = jax.block_until_ready(prenorm(x, gamma, beta, w, wb, mxu_dtype=jnp.float32))
    assert out.shape == (B, N, D) and out.dtype == x.dtype
    ref_fold = prenorm_ref_folded(x, gamma, beta, w, wb, jnp.float32)
    ref_true = prenorm_ref(x, gamma, beta, w, wb)
    # 1e-3: the in-kernel f32 dot carries no explicit precision flag (see header note).
    assert jnp.allclose(out, ref_fold, atol=1e-3, rtol=1e-3), "f32 mismatch vs folded reference"
    assert jnp.allclose(out, ref_true, atol=2e-3, rtol=2e-3), "f32 mismatch vs module reference"
    assert jnp.all(jnp.isfinite(out)), "non-finite values leaked from masked tail block"

    # --- Case B: bf16 HBM I/O + bf16 MXU operands, non-divisible R, grid >= 2 steps.
    B2, N2 = 2, 200
    xb = jax.random.normal(kx2, (B2, N2, D), dtype=jnp.float32).astype(jnp.bfloat16)
    outb = jax.block_until_ready(prenorm(xb, gamma, beta, w, wb, mxu_dtype=jnp.bfloat16))
    assert outb.shape == (B2, N2, D) and outb.dtype == jnp.bfloat16
    refb_fold = prenorm_ref_folded(xb, gamma, beta, w, wb, jnp.bfloat16).astype(jnp.float32)
    refb_true = prenorm_ref(xb, gamma, beta, w, wb)
    outb_f = outb.astype(jnp.float32)
    assert jnp.allclose(outb_f, refb_fold, atol=1e-2, rtol=1e-2), "bf16 mismatch vs folded reference"
    assert jnp.allclose(outb_f, refb_true, atol=8e-2, rtol=5e-2), "bf16 drift vs f32 module reference"
    assert jnp.all(jnp.isfinite(outb_f)), "non-finite values leaked from masked tail block"

    print("KERNEL_OK")
</pallas_src>

<mosaic_0001>
module attributes {stable_mosaic.version = 11 : i64} {
  func.func @prenorm_kernel(%arg0: i32, %arg1: memref<72x128xf32, #tpu.memory_space<vmem>>, %arg2: memref<128x128xf32, #tpu.memory_space<vmem>>, %arg3: memref<1x128xf32, #tpu.memory_space<vmem>>, %arg4: memref<72x128xf32, #tpu.memory_space<vmem>>) attributes {dimension_semantics = [#tpu.dimension_semantics<parallel>], iteration_bounds = array<i64: 2>, scalar_prefetch = 0 : i64, scratch_operands = 0 : i64, tpu.core_type = #tpu.core_type<tc>, window_params = [{transform_indices = @transform_0, window_bounds = array<i64: 72, 128>}, {pipeline_mode = #tpu.pipeline_mode<synchronous>, transform_indices = @transform_1, window_bounds = array<i64: 128, 128>}, {pipeline_mode = #tpu.pipeline_mode<synchronous>, transform_indices = @transform_2, window_bounds = array<i64: 1, 128>}, {transform_indices = @transform_3, window_bounds = array<i64: 72, 128>}]} {
    %c0 = arith.constant 0 : index
    %c0_0 = arith.constant 0 : index
    %0 = vector.load %arg1[%c0, %c0_0] : memref<72x128xf32, #tpu.memory_space<vmem>>, vector<72x128xf32>
    %cst = arith.constant dense<0.000000e+00> : vector<72xf32>
    %1 = vector.multi_reduction <add>, %0, %cst [1] : vector<72x128xf32> to vector<72xf32>
    %2 = vector.shape_cast %1 : vector<72xf32> to vector<72x1xf32>
    %cst_1 = arith.constant 1.280000e+02 : f32
    %3 = vector.broadcast %cst_1 : f32 to vector<72x1xf32>
    %4 = arith.divf %2, %3 : vector<72x1xf32>
    %5 = vector.broadcast %4 : vector<72x1xf32> to vector<72x128xf32>
    %6 = arith.subf %0, %5 : vector<72x128xf32>
    %7 = arith.mulf %6, %6 : vector<72x128xf32>
    %cst_2 = arith.constant dense<0.000000e+00> : vector<72xf32>
    %8 = vector.multi_reduction <add>, %7, %cst_2 [1] : vector<72x128xf32> to vector<72xf32>
    %9 = vector.shape_cast %8 : vector<72xf32> to vector<72x1xf32>
    %cst_3 = arith.constant 1.280000e+02 : f32
    %10 = vector.broadcast %cst_3 : f32 to vector<72x1xf32>
    %11 = arith.divf %9, %10 : vector<72x1xf32>
    %cst_4 = arith.constant 9.99999974E-6 : f32
    %12 = vector.broadcast %cst_4 : f32 to vector<72x1xf32>
    %13 = arith.addf %11, %12 : vector<72x1xf32>
    %14 = math.rsqrt %13 : vector<72x1xf32>
    %15 = vector.broadcast %14 : vector<72x1xf32> to vector<72x128xf32>
    %16 = arith.mulf %6, %15 : vector<72x128xf32>
    %c0_5 = arith.constant 0 : index
    %c0_6 = arith.constant 0 : index
    %17 = vector.load %arg2[%c0_5, %c0_6] : memref<128x128xf32, #tpu.memory_space<vmem>>, vector<128x128xf32>
    %cst_7 = arith.constant dense<0.000000e+00> : vector<72x128xf32>
    %18 = tpu.matmul %16, %17, %cst_7 {dimension_numbers = #tpu.dot_dimension_numbers<[1], [0], [0], [1], [0, 0, 1, 1], [], []>} : vector<72x128xf32>, vector<128x128xf32>, vector<72x128xf32> -> vector<72x128xf32>
    %c0_8 = arith.constant 0 : index
    %c0_9 = arith.constant 0 : index
    %19 = vector.load %arg3[%c0_8, %c0_9] : memref<1x128xf32, #tpu.memory_space<vmem>>, vector<1x128xf32>
    %20 = vector.broadcast %19 : vector<1x128xf32> to vector<72x128xf32>
    %21 = arith.addf %18, %20 : vector<72x128xf32>
    %c0_10 = arith.constant 0 : index
    %c0_11 = arith.constant 0 : index
    %22 = vector.load %arg4[%c0_10, %c0_11] : memref<72x128xf32, #tpu.memory_space<vmem>>, vector<72x128xf32>
    tpu.vector_store %arg4[%c0_10, %c0_11], %21 {strides = array<i32>} : memref<72x128xf32, #tpu.memory_space<vmem>>, vector<72x128xf32>,
    return
  }
  func.func @transform_0(%arg0: i32) -> (i32, i32) {
    %c0_i32 = arith.constant 0 : i32
    %c0_i32_0 = arith.constant 0 : i32
    return %arg0, %c0_i32 : i32, i32
  }
  func.func @transform_1(%arg0: i32) -> (i32, i32) {
    %c0_i32 = arith.constant 0 : i32
    %c0_i32_0 = arith.constant 0 : i32
    %c0_i32_1 = arith.constant 0 : i32
    return %c0_i32, %c0_i32_0 : i32, i32
  }
  func.func @transform_2(%arg0: i32) -> (i32, i32) {
    %c0_i32 = arith.constant 0 : i32
    %c0_i32_0 = arith.constant 0 : i32
    %c0_i32_1 = arith.constant 0 : i32
    return %c0_i32, %c0_i32_0 : i32, i32
  }
  func.func @transform_3(%arg0: i32) -> (i32, i32) {
    %c0_i32 = arith.constant 0 : i32
    %c0_i32_0 = arith.constant 0 : i32
    return %arg0, %c0_i32 : i32, i32
  }
}

module attributes {stable_mosaic.version = 11 : i64} {
  func.func @prenorm_kernel(%arg0: i32, %arg1: memref<72x128xf32, #tpu.memory_space<vmem>>, %arg2: memref<128x128xf32, #tpu.memory_space<vmem>>, %arg3: memref<1x128xf32, #tpu.memory_space<vmem>>, %arg4: memref<72x128xf32, #tpu.memory_space<vmem>>) attributes {dimension_semantics = [#tpu.dimension_semantics<parallel>], iteration_bounds = array<i64: 2>, scalar_prefetch = 0 : i64, scratch_operands = 0 : i64, tpu.core_type = #tpu.core_type<tc>, window_params = [{transform_indices = @transform_0, window_bounds = array<i64: 72, 128>}, {pipeline_mode = #tpu.pipeline_mode<synchronous>, transform_indices = @transform_1, window_bounds = array<i64: 128, 128>}, {pipeline_mode = #tpu.pipeline_mode<synchronous>, transform_indices = @transform_2, window_bounds = array<i64: 1, 128>}, {transform_indices = @transform_3, window_bounds = array<i64: 72, 128>}]} {
    %c0 = arith.constant 0 : index
    %c0_0 = arith.constant 0 : index
    %0 = vector.load %arg1[%c0, %c0_0] : memref<72x128xf32, #tpu.memory_space<vmem>>, vector<72x128xf32>
    %cst = arith.constant dense<0.000000e+00> : vector<72xf32>
    %1 = vector.multi_reduction <add>, %0, %cst [1] : vector<72x128xf32> to vector<72xf32>
    %2 = vector.shape_cast %1 : vector<72xf32> to vector<72x1xf32>
    %cst_1 = arith.constant 1.280000e+02 : f32
    %3 = vector.broadcast %cst_1 : f32 to vector<72x1xf32>
    %4 = arith.divf %2, %3 : vector<72x1xf32>
    %5 = vector.broadcast %4 : vector<72x1xf32> to vector<72x128xf32>
    %6 = arith.subf %0, %5 : vector<72x128xf32>
    %7 = arith.mulf %6, %6 : vector<72x128xf32>
    %cst_2 = arith.constant dense<0.000000e+00> : vector<72xf32>
    %8 = vector.multi_reduction <add>, %7, %cst_2 [1] : vector<72x128xf32> to vector<72xf32>
    %9 = vector.shape_cast %8 : vector<72xf32> to vector<72x1xf32>
    %cst_3 = arith.constant 1.280000e+02 : f32
    %10 = vector.broadcast %cst_3 : f32 to vector<72x1xf32>
    %11 = arith.divf %9, %10 : vector<72x1xf32>
    %cst_4 = arith.constant 9.99999974E-6 : f32
    %12 = vector.broadcast %cst_4 : f32 to vector<72x1xf32>
    %13 = arith.addf %11, %12 : vector<72x1xf32>
    %14 = math.rsqrt %13 : vector<72x1xf32>
    %15 = vector.broadcast %14 : vector<72x1xf32> to vector<72x128xf32>
    %16 = arith.mulf %6, %15 : vector<72x128xf32>
    %c0_5 = arith.constant 0 : index
    %c0_6 = arith.constant 0 : index
    %17 = vector.load %arg2[%c0_5, %c0_6] : memref<128x128xf32, #tpu.memory_space<vmem>>, vector<128x128xf32>
    %cst_7 = arith.constant dense<0.000000e+00> : vector<72x128xf32>
    %18 = tpu.matmul %16, %17, %cst_7 {dimension_numbers = #tpu.dot_dimension_numbers<[1], [0], [0], [1], [0, 0, 1, 1], [], []>} : vector<72x128xf32>, vector<128x128xf32>, vector<72x128xf32> -> vector<72x128xf32>
    %c0_8 = arith.constant 0 : index
    %c0_9 = arith.constant 0 : index
    %19 = vector.load %arg3[%c0_8, %c0_9] : memref<1x128xf32, #tpu.memory_space<vmem>>, vector<1x128xf32>
    %20 = vector.broadcast %19 : vector<1x128xf32> to vector<72x128xf32>
    %21 = arith.addf %18, %20 : vector<72x128xf32>
    %c0_10 = arith.constant 0 : index
    %c0_11 = arith.constant 0 : index
    %22 = vector.load %arg4[%c0_10, %c0_11] : memref<72x128xf32, #tpu.memory_space<vmem>>, vector<72x128xf32>
    tpu.vector_store %arg4[%c0_10, %c0_11], %21 {strides = array<i32>} : memref<72x128xf32, #tpu.memory_space<vmem>>, vector<72x128xf32>,
    return
  }
  func.func @transform_0(%arg0: i32) -> (i32, i32) {
    %c0_i32 = arith.constant 0 : i32
    %c0_i32_0 = arith.constant 0 : i32
    return %arg0, %c0_i32 : i32, i32
  }
  func.func @transform_1(%arg0: i32) -> (i32, i32) {
    %c0_i32 = arith.constant 0 : i32
    %c0_i32_0 = arith.constant 0 : i32
    %c0_i32_1 = arith.constant 0 : i32
    return %c0_i32, %c0_i32_0 : i32, i32
  }
  func.func @transform_2(%arg0: i32) -> (i32, i32) {
    %c0_i32 = arith.constant 0 : i32
    %c0_i32_0 = arith.constant 0 : i32
    %c0_i32_1 = arith.constant 0 : i32
    return %c0_i32, %c0_i32_0 : i32, i32
  }
  func.func @transform_3(%arg0: i32) -> (i32, i32) {
    %c0_i32 = arith.constant 0 : i32
    %c0_i32_0 = arith.constant 0 : i32
    return %arg0, %c0_i32 : i32, i32
  }
}

</mosaic_0001>

<llo_original>
// kernel: tpu_custom_call.1
$region0: #{tpu_custom_call.1}
  #allocation0 [shape = 'u32[]', space=smem, size = 0x4, offset = 0x4, fixed_abs, tag = 'smem constant byte address 0x4 - core index']
  #allocation1 [shape = 'u32[72,128]{1,0:T(1,128)}', space=vmem, size = 0x9000, scoped, tag = 'internal scratch']
  %s0 = inlined_call_operand.hbm [shape: f32[132,128], index: 0, kind: input, shape index: {}]
  %s1 = inlined_call_operand.hbm [shape: f32[128,128], index: 1, kind: input, shape index: {}]
  %s2 = inlined_call_operand.vmem [shape: f32[1,128], index: 2, kind: input, shape index: {}]
  %s3 = inlined_call_operand.hbm [shape: f32[132,128], index: 3, kind: output, shape index: {}]
  %s4 = sld [smem:[#allocation0]]
  $region53: #{tpu_custom_call.1} parent=0
    _
  %s6 = ssub.s32 1, %s4
  %s7 = scalar_select 0, %s6, %s4
  $region1: #{tpu_custom_call.1} parent=0
    #allocation2 [shape = 'u8[73728]{0}', space=vmem, size = 0x12000, scoped, tag = 'input window, operand 0']
    #allocation3 [shape = 's32[2]{0}', space=sflag, size = 0x8, scoped, tag = 'scoped memory for tpu_custom_call.1']
    #allocation4 [shape = 's32[2]{0}', space=sflag, size = 0x8, scoped, tag = 'scoped memory for tpu_custom_call.1']
    #allocation5 [shape = 'u8[65536]{0}', space=vmem, size = 0x10000, scoped, tag = 'input window, operand 1, single buffered']
    #allocation6 [shape = 's32[1]{0}', space=sflag, size = 0x4, scoped, tag = 'scoped memory for tpu_custom_call.1']
    #allocation7 [shape = 'u8[73728]{0}', space=vmem, size = 0x12000, scoped, tag = 'output window, operand 0']
    %8 = vsyncpa [#allocation3], 0
    %s9 = scalar_lea.sflag [#allocation3], 1
    %10 = vsyncpa %s9, 0
    %11 = vsyncpa [#allocation6], 0
    %12 = vsyncpa [#allocation4], 0
    %s13 = scalar_lea.sflag [#allocation4], 1
    %14 = vsyncpa %s13, 0
    loop: start=0, step=1, limit=4
    $region2: #{tpu_custom_call.1} parent=1 // loop_pre_header
      _
    $region3: #{tpu_custom_call.1} parent=1 // loop_header
      %s16 = sphi 0, %s20
      %p17 = scmp.ge.s32.totalorder %s16, 4
      %s26 = sphi 0, %s28
      %s29 = sphi 0, %s26
      %s30 = sphi 0, %s29
      %s46 = sphi 0, %s30
      %s50 = sphi 0, %s50
      %s52 = sphi 0, %s50
      %s53 = sphi 0, %s52
      %s67 = sphi 0, %s53
      %s71 = sphi 0, %s71
      %s73 = sphi 0, %s71
      %s74 = sphi 0, %s73
      %s88 = sphi 0, %s74
      %s94 = sphi 0, %s96
      %s97 = sphi 0, %s94
      %s98 = sphi 0, %s97
      %s114 = sphi 0, %s98
    $region4: #{tpu_custom_call.1} parent=1 // loop_header_branch
      %19 = sbr.rel (%p17) target = $region8
    $region5: #{tpu_custom_call.1} parent=1 // loop_body
      %s21 = ssub.s32 %s16, 1
      %s22 = ssub.s32 %s16, 2
      %s23 = sadd.s32 %s16, 1
      %s24 = ssub.s32 %s16, %s23
      %p25 = scmp.eq.s32.totalorder %s24, 0
      %s27 = sadd.s32 %s26, 1
      %s28 = scalar_select %p25, %s26, %s27
      %p31 = pneg %p25
      %p32 = scmp.eq.s32.totalorder %s16, 1
      %p33 = por %p31, %p32
      %p34 = scmp.ne.s32.totalorder %s26, %s29
      %p35 = scmp.eq.s32.totalorder %s16, 0
      %p36 = por %p34, %p35
      %p37 = scmp.ne.s32.totalorder %s26, %s29
      %p38 = scmp.eq.s32.totalorder %s21, 1
      %p39 = por %p37, %p38
      %p40 = scmp.ne.s32.totalorder %s29, %s30
      %p41 = scmp.eq.s32.totalorder %s21, 0
      %p42 = por %p40, %p41
      %p43 = scmp.ne.s32.totalorder %s29, %s30
      %p44 = scmp.eq.s32.totalorder %s22, 1
      %p45 = por %p43, %p44
      %p47 = scmp.ne.s32.totalorder %s30, %s46
      %p48 = scmp.eq.s32.totalorder %s22, 0
      %p49 = por %p47, %p48
      %s51 = sadd.s32 %s50, 1
      %p54 = scmp.eq.s32.totalorder %s16, 1
      %p55 = scmp.ne.s32.totalorder %s50, %s52
      %p56 = scmp.eq.s32.totalorder %s16, 0
      %p57 = por %p55, %p56
      %p58 = scmp.ne.s32.totalorder %s50, %s52
      %p59 = scmp.eq.s32.totalorder %s21, 1
      %p60 = por %p58, %p59
      %p61 = scmp.ne.s32.totalorder %s52, %s53
      %p62 = scmp.eq.s32.totalorder %s21, 0
      %p63 = por %p61, %p62
      %p64 = scmp.ne.s32.totalorder %s52, %s53
      %p65 = scmp.eq.s32.totalorder %s22, 1
      %p66 = por %p64, %p65
      %p68 = scmp.ne.s32.totalorder %s53, %s67
      %p69 = scmp.eq.s32.totalorder %s22, 0
      %p70 = por %p68, %p69
      %s72 = sadd.s32 %s71, 1
      %p75 = scmp.eq.s32.totalorder %s16, 1
      %p76 = scmp.ne.s32.totalorder %s71, %s73
      %p77 = scmp.eq.s32.totalorder %s16, 0
      %p78 = por %p76, %p77
      %p79 = scmp.ne.s32.totalorder %s71, %s73
      %p80 = scmp.eq.s32.totalorder %s21, 1
      %p81 = por %p79, %p80
      %p82 = scmp.ne.s32.totalorder %s73, %s74
      %p83 = scmp.eq.s32.totalorder %s21, 0
      %p84 = por %p82, %p83
      %p85 = scmp.ne.s32.totalorder %s73, %s74
      %p86 = scmp.eq.s32.totalorder %s22, 1
      %p87 = por %p85, %p86
      %p89 = scmp.ne.s32.totalorder %s74, %s88
      %p90 = scmp.eq.s32.totalorder %s22, 0
      %p91 = por %p89, %p90
      %s92 = ssub.s32 %s16, %s23
      %p93 = scmp.eq.s32.totalorder %s92, 0
      %s95 = sadd.s32 %s94, 1
      %s96 = scalar_select %p93, %s94, %s95
      %p99 = pneg %p93
      %p100 = scmp.eq.s32.totalorder %s16, 1
      %p101 = por %p99, %p100
      %p102 = scmp.ne.s32.totalorder %s94, %s97
      %p103 = scmp.eq.s32.totalorder %s16, 0
      %p104 = por %p102, %p103
      %p105 = scmp.ne.s32.totalorder %s94, %s97
      %p106 = scmp.eq.s32.totalorder %s21, 1
      %p107 = por %p105, %p106
      %p108 = scmp.ne.s32.totalorder %s97, %s98
      %p109 = scmp.eq.s32.totalorder %s21, 0
      %p110 = por %p108, %p109
      %p111 = scmp.ne.s32.totalorder %s97, %s98
      %p112 = scmp.eq.s32.totalorder %s22, 1
      %p113 = por %p111, %p112
      %p115 = scmp.ne.s32.totalorder %s98, %s114
      %p116 = scmp.eq.s32.totalorder %s22, 0
      %p117 = por %p115, %p116
      %p118 = scmp.le.s32.totalorder 1, %s16
      %p119 = scmp.lt.s32.totalorder %s16, 3
      %p120 = pnand %p118, %p119
      %p121 = pneg %p120
      // Predicated region
      $region9: #{tpu_custom_call.1} parent=5 // pred_check
        _
      $region10: #{tpu_custom_call.1} parent=5 // pred_check_branch
        %123 = sbr.rel (%p120) target = $region12
      $region11: #{tpu_custom_call.1} parent=5 // pred_region
        %s124 = ssub.s32 %s16, 1
        // Predicated region
        $region13: #{tpu_custom_call.1} parent=11 // pred_check
          %p125 = pneg %p63
        $region14: #{tpu_custom_call.1} parent=11 // pred_check_branch
          %127 = sbr.rel (%p125) target = $region16
        $region15: #{tpu_custom_call.1} parent=11 // pred_region
          %129 = vsyncadd [#allocation6], 0
          %s130 = sshll.u32 %s1, 4
          %s131 = int_to_ptr.hbm [resolvable:$true] %s130
          %s132 = sshll.u32 [#allocation5], 4
          %s133 = int_to_ptr.vmem [resolvable:$true] %s132
          %138 = dma.hbm_to_vmem [thread:$0]  %s131, 2048, %s133, [#allocation6], 128, 128, 8
        $region16: #{tpu_custom_call.1} parent=11 // pred_fallthru
          _
        // Predicated region
        $region17: #{tpu_custom_call.1} parent=11 // pred_check
          %p139 = pneg %p84
        $region18: #{tpu_custom_call.1} parent=11 // pred_check_branch
          %141 = sbr.rel (%p139) target = $region20
        $region19: #{tpu_custom_call.1} parent=11 // pred_region
          _
        $region20: #{tpu_custom_call.1} parent=11 // pred_fallthru
          _
      $region12: #{tpu_custom_call.1} parent=5 // pred_fallthru
        _
      %p142 = scmp.lt.s32.totalorder %s16, 2
      // Predicated region
      $region21: #{tpu_custom_call.1} parent=5 // pred_check
        %p143 = pneg %p142
      $region22: #{tpu_custom_call.1} parent=5 // pred_check_branch
        %145 = sbr.rel (%p143) target = $region24
      $region23: #{tpu_custom_call.1} parent=5 // pred_region
        // Predicated region
        $region25: #{tpu_custom_call.1} parent=23 // pred_check
          %p146 = pneg %p36
        $region26: #{tpu_custom_call.1} parent=23 // pred_check_branch
          %148 = sbr.rel (%p146) target = $region28
        $region27: #{tpu_custom_call.1} parent=23 // pred_region
          %s149 = sand.u32 %s26, 1
          %s150 = scalar_lea.sflag [#allocation3], %s149
          %s151 = sand.u32 %s26, 1
          %s152 = smul.addr %s151, 72
          %s153 = scalar_lea.vmem [#allocation2], %s152
          %s154 = smul.u32 9, %s16
          %s155 = ssub.s32 17, %s154
          %p156 = scmp.lt.s32.totalorder %s155, 9
          %s157 = scalar_select %p156, %s155, 9
          %s158 = smul.u32 8, %s157
          %s159 = ssub.s32 72, %s158
          %s160 = sshll.u32 %s159, 4
          %161 = vsyncadd %s150, %s160
          %p162 = scmp.ne.s32.totalorder 0, %s158
          %s163 = smul.addr %s154, 8
          %s164 = scalar_lea.hbm %s0, %s163
          %s165 = smul.u32 8, %s157
          %s166 = sshll.u32 %s164, 4
          %s167 = int_to_ptr.hbm [resolvable:$true] %s166
          %s168 = sshll.u32 %s153, 4
          %s169 = int_to_ptr.vmem [resolvable:$true] %s168
          %s170 = sshll.u32 %s165, 4
          %174 = dma.hbm_to_vmem [thread:$0]  (%p162), %s167, %s170, %s169, %s150, 128, 128, 8
        $region28: #{tpu_custom_call.1} parent=23 // pred_fallthru
          _
      $region24: #{tpu_custom_call.1} parent=5 // pred_fallthru
        _
      %p175 = scmp.le.s32.totalorder 1, %s16
      %p176 = scmp.lt.s32.totalorder %s16, 3
      %p177 = pnand %p175, %p176
      %p178 = pneg %p177
      // Predicated region
      $region29: #{tpu_custom_call.1} parent=5 // pred_check
        _
      $region30: #{tpu_custom_call.1} parent=5 // pred_check_branch
        %180 = sbr.rel (%p177) target = $region32
      $region31: #{tpu_custom_call.1} parent=5 // pred_region
        %s181 = ssub.s32 %s16, 1
        %s182 = sand.u32 %s29, 1
        %s183 = scalar_lea.sflag [#allocation3], %s182
        %s184 = sand.u32 %s29, 1
        %s185 = smul.addr %s184, 72
        %s186 = scalar_lea.vmem [#allocation2], %s185
        // Predicated region
        $region33: #{tpu_custom_call.1} parent=31 // pred_check
          %p187 = pneg %p42
        $region34: #{tpu_custom_call.1} parent=31 // pred_check_branch
          %189 = sbr.rel (%p187) target = $region36
        $region35: #{tpu_custom_call.1} parent=31 // pred_region
          %191 = dma.done %s183, 1152
        $region36: #{tpu_custom_call.1} parent=31 // pred_fallthru
          _
        // Predicated region
        $region37: #{tpu_custom_call.1} parent=31 // pred_check
          %p192 = pneg %p63
        $region38: #{tpu_custom_call.1} parent=31 // pred_check_branch
          %194 = sbr.rel (%p192) target = $region40
        $region39: #{tpu_custom_call.1} parent=31 // pred_region
          %196 = dma.done [#allocation6], 2048
        $region40: #{tpu_custom_call.1} parent=31 // pred_fallthru
          _
        %s197 = sand.u32 %s29, 1
        %s198 = scalar_lea.sflag [#allocation3], %s197
        %s199 = sand.u32 %s29, 1
        %s200 = smul.addr %s199, 72
        %s201 = scalar_lea.vmem [#allocation2], %s200
        %p202 = pneg %p42
        %p203 = pneg %p39
        %p204 = pneg %p63
        %p205 = pneg %p60
        %p206 = pneg %p84
        %p207 = pneg %p81
        %p208 = pneg %p110
        %p209 = pneg %p107
        %s210 = sand.u32 %s97, 1
        %s211 = scalar_lea.sflag [#allocation4], %s210
        %s212 = sand.u32 %s97, 1
        %s213 = smul.addr %s212, 72
        %s214 = scalar_lea.vmem [#allocation7], %s213
        %s215 = smul.u32 9, %s21
        %s216 = ssub.s32 17, %s215
        %p217 = scmp.lt.s32.totalorder %s216, 9
        %s218 = scalar_select %p217, %s216, 9
        %s219 = smul.u32 8, %s218
        %s220 = smul.u32 9, %s21
        %s221 = ssub.s32 17, %s220
        %p222 = scmp.lt.s32.totalorder %s221, 9
        %s223 = scalar_select %p222, %s221, 9
        %s224 = smul.u32 8, %s223
        %v225 = vld [vmem:[%s186] sm:$0xff]
        %v226 = vld [vmem:[%s186 + $0x8] sm:$0xff]
        %v227 = vld [vmem:[%s186 + $0x10] sm:$0xff]
        %v228 = vld [vmem:[%s186 + $0x18] sm:$0xff]
        %v229 = vld [vmem:[%s186 + $0x20] sm:$0xff]
        %v230 = vld [vmem:[%s186 + $0x28] sm:$0xff]
        %v231 = vld [vmem:[%s186 + $0x30] sm:$0xff]
        %v232 = vld [vmem:[%s186 + $0x38] sm:$0xff]
        %v233 = vld [vmem:[%s186 + $0x40] sm:$0xff]
        %234 = vadd.xlane.f32.xlu0 %v225
        %v235 = vpop.xlane.xlu0 %234
        %236 = vadd.xlane.f32.xlu0 %v226
        %v237 = vpop.xlane.xlu0 %236
        %238 = vadd.xlane.f32.xlu0 %v227
        %v239 = vpop.xlane.xlu0 %238
        %240 = vadd.xlane.f32.xlu0 %v228
        %v241 = vpop.xlane.xlu0 %240
        %242 = vadd.xlane.f32.xlu0 %v229
        %v243 = vpop.xlane.xlu0 %242
        %244 = vadd.xlane.f32.xlu0 %v230
        %v245 = vpop.xlane.xlu0 %244
        %246 = vadd.xlane.f32.xlu0 %v231
        %v247 = vpop.xlane.xlu0 %246
        %248 = vadd.xlane.f32.xlu0 %v232
        %v249 = vpop.xlane.xlu0 %248
        %250 = vadd.xlane.f32.xlu0 %v233
        %v251 = vpop.xlane.xlu0 %250
        %v252 = vrcp.pop 128.0
        %v253 = vmul.f32 128.0, %v252
        %v254 = vsub.f32 1.0, %v253
        %v255 = vmul.f32 %v252, %v254
        %v256 = vadd.f32 %v252, %v255
        %vm257 = vweird.f32 %v252
        %v258 = vsel %vm257, %v252, %v256
        %v259 = vmul.f32 %v235, %v258
        %v260 = vmul.f32 %v237, %v258
        %v261 = vmul.f32 %v239, %v258
        %v262 = vmul.f32 %v241, %v258
        %v263 = vmul.f32 %v243, %v258
        %v264 = vmul.f32 %v245, %v258
        %v265 = vmul.f32 %v247, %v258
        %v266 = vmul.f32 %v249, %v258
        %v267 = vmul.f32 %v251, %v258
        %v268 = vsub.f32 %v225, %v259
        %v269 = vsub.f32 %v226, %v260
        %v270 = vsub.f32 %v227, %v261
        %v271 = vsub.f32 %v228, %v262
        %v272 = vsub.f32 %v229, %v263
        %v273 = vsub.f32 %v230, %v264
        %v274 = vsub.f32 %v231, %v265
        %v275 = vsub.f32 %v232, %v266
        %v276 = vsub.f32 %v233, %v267
        %v277 = vmul.f32 %v268, %v268
        %v278 = vmul.f32 %v269, %v269
        %v279 = vmul.f32 %v270, %v270
        %v280 = vmul.f32 %v271, %v271
        %v281 = vmul.f32 %v272, %v272
        %v282 = vmul.f32 %v273, %v273
        %v283 = vmul.f32 %v274, %v274
        %v284 = vmul.f32 %v275, %v275
        %v285 = vmul.f32 %v276, %v276
        %286 = vadd.xlane.f32.xlu0 %v277
        %v287 = vpop.xlane.xlu0 %286
        %288 = vadd.xlane.f32.xlu0 %v278
        %v289 = vpop.xlane.xlu0 %288
        %290 = vadd.xlane.f32.xlu0 %v279
        %v291 = vpop.xlane.xlu0 %290
        %292 = vadd.xlane.f32.xlu0 %v280
        %v293 = vpop.xlane.xlu0 %292
        %294 = vadd.xlane.f32.xlu0 %v281
        %v295 = vpop.xlane.xlu0 %294
        %296 = vadd.xlane.f32.xlu0 %v282
        %v297 = vpop.xlane.xlu0 %296
        %298 = vadd.xlane.f32.xlu0 %v283
        %v299 = vpop.xlane.xlu0 %298
        %300 = vadd.xlane.f32.xlu0 %v284
        %v301 = vpop.xlane.xlu0 %300
        %302 = vadd.xlane.f32.xlu0 %v285
        %v303 = vpop.xlane.xlu0 %302
        %v304 = vmul.f32 %v287, %v258
        %v305 = vmul.f32 %v289, %v258
        %v306 = vmul.f32 %v291, %v258
        %v307 = vmul.f32 %v293, %v258
        %v308 = vmul.f32 %v295, %v258
        %v309 = vmul.f32 %v297, %v258
        %v310 = vmul.f32 %v299, %v258
        %v311 = vmul.f32 %v301, %v258
        %v312 = vmul.f32 %v303, %v258
        %v313 = vadd.f32 %v304, 1e-05
        %v314 = vadd.f32 %v305, 1e-05
        %v315 = vadd.f32 %v306, 1e-05
        %v316 = vadd.f32 %v307, 1e-05
        %v317 = vadd.f32 %v308, 1e-05
        %v318 = vadd.f32 %v309, 1e-05
        %v319 = vadd.f32 %v310, 1e-05
        %v320 = vadd.f32 %v311, 1e-05
        %v321 = vadd.f32 %v312, 1e-05
        %v322 = vrsqrt.pop %v313
        %v323 = vmul.f32 %v322, %v313
        %v324 = vmul.f32 %v323, %v322
        %v325 = vmul.f32 0.5, %v324
        %v326 = vsub.f32 1.5, %v325
        %v327 = vmul.f32 %v322, %v326
        %vm328 = vweird.f32 %v313
        %vm329 = vweird.f32 %v322
        %vm330 = vmor %vm328, %vm329
        %v331 = vsel %vm330, %v322, %v327
        %v332 = vrsqrt.pop %v314
        %v333 = vmul.f32 %v332, %v314
        %v334 = vmul.f32 %v333, %v332
        %v335 = vmul.f32 0.5, %v334
        %v336 = vsub.f32 1.5, %v335
        %v337 = vmul.f32 %v332, %v336
        %vm338 = vweird.f32 %v314
        %vm339 = vweird.f32 %v332
        %vm340 = vmor %vm338, %vm339
        %v341 = vsel %vm340, %v332, %v337
        %v342 = vrsqrt.pop %v315
        %v343 = vmul.f32 %v342, %v315
        %v344 = vmul.f32 %v343, %v342
        %v345 = vmul.f32 0.5, %v344
        %v346 = vsub.f32 1.5, %v345
        %v347 = vmul.f32 %v342, %v346
        %vm348 = vweird.f32 %v315
        %vm349 = vweird.f32 %v342
        %vm350 = vmor %vm348, %vm349
        %v351 = vsel %vm350, %v342, %v347
        %v352 = vrsqrt.pop %v316
        %v353 = vmul.f32 %v352, %v316
        %v354 = vmul.f32 %v353, %v352
        %v355 = vmul.f32 0.5, %v354
        %v356 = vsub.f32 1.5, %v355
        %v357 = vmul.f32 %v352, %v356
        %vm358 = vweird.f32 %v316
        %vm359 = vweird.f32 %v352
        %vm360 = vmor %vm358, %vm359
        %v361 = vsel %vm360, %v352, %v357
        %v362 = vrsqrt.pop %v317
        %v363 = vmul.f32 %v362, %v317
        %v364 = vmul.f32 %v363, %v362
        %v365 = vmul.f32 0.5, %v364
        %v366 = vsub.f32 1.5, %v365
        %v367 = vmul.f32 %v362, %v366
        %vm368 = vweird.f32 %v317
        %vm369 = vweird.f32 %v362
        %vm370 = vmor %vm368, %vm369
        %v371 = vsel %vm370, %v362, %v367
        %v372 = vrsqrt.pop %v318
        %v373 = vmul.f32 %v372, %v318
        %v374 = vmul.f32 %v373, %v372
        %v375 = vmul.f32 0.5, %v374
        %v376 = vsub.f32 1.5, %v375
        %v377 = vmul.f32 %v372, %v376
        %vm378 = vweird.f32 %v318
        %vm379 = vweird.f32 %v372
        %vm380 = vmor %vm378, %vm379
        %v381 = vsel %vm380, %v372, %v377
        %v382 = vrsqrt.pop %v319
        %v383 = vmul.f32 %v382, %v319
        %v384 = vmul.f32 %v383, %v382
        %v385 = vmul.f32 0.5, %v384
        %v386 = vsub.f32 1.5, %v385
        %v387 = vmul.f32 %v382, %v386
        %vm388 = vweird.f32 %v319
        %vm389 = vweird.f32 %v382
        %vm390 = vmor %vm388, %vm389
        %v391 = vsel %vm390, %v382, %v387
        %v392 = vrsqrt.pop %v320
        %v393 = vmul.f32 %v392, %v320
        %v394 = vmul.f32 %v393, %v392
        %v395 = vmul.f32 0.5, %v394
        %v396 = vsub.f32 1.5, %v395
        %v397 = vmul.f32 %v392, %v396
        %vm398 = vweird.f32 %v320
        %vm399 = vweird.f32 %v392
        %vm400 = vmor %vm398, %vm399
        %v401 = vsel %vm400, %v392, %v397
        %v402 = vrsqrt.pop %v321
        %v403 = vmul.f32 %v402, %v321
        %v404 = vmul.f32 %v403, %v402
        %v405 = vmul.f32 0.5, %v404
        %v406 = vsub.f32 1.5, %v405
        %v407 = vmul.f32 %v402, %v406
        %vm408 = vweird.f32 %v321
        %vm409 = vweird.f32 %v402
        %vm410 = vmor %vm408, %vm409
        %v411 = vsel %vm410, %v402, %v407
        %v412 = vmul.f32 %v268, %v331
        %v413 = vmul.f32 %v269, %v341
        %v414 = vmul.f32 %v270, %v351
        %v415 = vmul.f32 %v271, %v361
        %v416 = vmul.f32 %v272, %v371
        %v417 = vmul.f32 %v273, %v381
        %v418 = vmul.f32 %v274, %v391
        %v419 = vmul.f32 %v275, %v401
        %v420 = vmul.f32 %v276, %v411
        %v421 = vld [vmem:[#allocation5] sm:$0xff]
        %v422 = vld [vmem:[#allocation5 + $0x8] sm:$0xff]
        %v423 = vld [vmem:[#allocation5 + $0x10] sm:$0xff]
        %v424 = vld [vmem:[#allocation5 + $0x18] sm:$0xff]
        %v425 = vld [vmem:[#allocation5 + $0x20] sm:$0xff]
        %v426 = vld [vmem:[#allocation5 + $0x28] sm:$0xff]
        %v427 = vld [vmem:[#allocation5 + $0x30] sm:$0xff]
        %v428 = vld [vmem:[#allocation5 + $0x38] sm:$0xff]
        %v429 = vld [vmem:[#allocation5 + $0x40] sm:$0xff]
        %v430 = vld [vmem:[#allocation5 + $0x48] sm:$0xff]
        %v431 = vld [vmem:[#allocation5 + $0x50] sm:$0xff]
        %v432 = vld [vmem:[#allocation5 + $0x58] sm:$0xff]
        %v433 = vld [vmem:[#allocation5 + $0x60] sm:$0xff]
        %v434 = vld [vmem:[#allocation5 + $0x68] sm:$0xff]
        %v435 = vld [vmem:[#allocation5 + $0x70] sm:$0xff]
        %v436 = vld [vmem:[#allocation5 + $0x78] sm:$0xff]
        %v437 = vld [vmem:[%s2] sm:$0x1]
        %v439 = vperm.slane %v437, 0
        %441 = vmatpush.msra.mxu0 %v436
        %442 = vmatpush.msra.mxu0 %v435
        %443 = vmatpush.msra.mxu0 %v434
        %444 = vmatpush.msra.mxu0 %v433
        %445 = vmatpush.msra.mxu0 %v432
        %446 = vmatpush.msra.mxu0 %v431
        %447 = vmatpush.msra.mxu0 %v430
        %448 = vmatpush.msra.mxu0 %v429
        %449 = vmatpush.msra.mxu0 %v428
        %450 = vmatpush.msra.mxu0 %v427
        %451 = vmatpush.msra.mxu0 %v426
        %452 = vmatpush.msra.mxu0 %v425
        %453 = vmatpush.msra.mxu0 %v424
        %454 = vmatpush.msra.mxu0 %v423
        %455 = vmatpush.msra.mxu0 %v422
        %456 = vmatpush.msra.mxu0 %v421
        %457 = vmatmul.f32.gmra.mxu0 %v412
        %v458 = vpop.f32.mrf.mxu0
        %v459 = vadd.f32 %v439, %v458
        %460 = vmatmul.f32.gmra.mxu0 %v413
        %v461 = vpop.f32.mrf.mxu0
        %v462 = vadd.f32 %v439, %v461
        %463 = vmatmul.f32.gmra.mxu0 %v414
        %v464 = vpop.f32.mrf.mxu0
        %v465 = vadd.f32 %v439, %v464
        %466 = vmatmul.f32.gmra.mxu0 %v415
        %v467 = vpop.f32.mrf.mxu0
        %v468 = vadd.f32 %v439, %v467
        %469 = vmatmul.f32.gmra.mxu0 %v416
        %v470 = vpop.f32.mrf.mxu0
        %v471 = vadd.f32 %v439, %v470
        %472 = vmatmul.f32.gmra.mxu0 %v417
        %v473 = vpop.f32.mrf.mxu0
        %v474 = vadd.f32 %v439, %v473
        %475 = vmatmul.f32.gmra.mxu0 %v418
        %v476 = vpop.f32.mrf.mxu0
        %v477 = vadd.f32 %v439, %v476
        %478 = vmatmul.f32.gmra.mxu0 %v419
        %v479 = vpop.f32.mrf.mxu0
        %v480 = vadd.f32 %v439, %v479
        %481 = vmatmul.f32.gmra.mxu0 %v420
        %v482 = vpop.f32.mrf.mxu0
        %v483 = vadd.f32 %v439, %v482
        %484 = vdwg.mxu0
        %485 = vst [vmem:[%s214] sm:$0xff] %v459
        %486 = vst [vmem:[%s214 + $0x8] sm:$0xff] %v462
        %487 = vst [vmem:[%s214 + $0x10] sm:$0xff] %v465
        %488 = vst [vmem:[%s214 + $0x18] sm:$0xff] %v468
        %489 = vst [vmem:[%s214 + $0x20] sm:$0xff] %v471
        %490 = vst [vmem:[%s214 + $0x28] sm:$0xff] %v474
        %491 = vst [vmem:[%s214 + $0x30] sm:$0xff] %v477
        %492 = vst [vmem:[%s214 + $0x38] sm:$0xff] %v480
        %493 = vst [vmem:[%s214 + $0x40] sm:$0xff] %v483
        %s494 = sand.u32 %s97, 1
        %s495 = scalar_lea.sflag [#allocation4], %s494
        %s496 = sand.u32 %s97, 1
        %s497 = smul.addr %s496, 72
        %s498 = scalar_lea.vmem [#allocation7], %s497
        // Predicated region
        $region41: #{tpu_custom_call.1} parent=31 // pred_check
          %p499 = pneg %p107
        $region42: #{tpu_custom_call.1} parent=31 // pred_check_branch
          %501 = sbr.rel (%p499) target = $region44
        $region43: #{tpu_custom_call.1} parent=31 // pred_region
          %s502 = smul.u32 9, %s21
          %s503 = ssub.s32 17, %s502
          %p504 = scmp.lt.s32.totalorder %s503, 9
          %s505 = scalar_select %p504, %s503, 9
          %s506 = smul.u32 8, %s505
          %s507 = ssub.s32 72, %s506
          %s508 = sshll.u32 %s507, 4
          %509 = vsyncadd %s495, %s508
          %p510 = scmp.ne.s32.totalorder 0, %s506
          %s511 = smul.addr %s502, 8
          %s512 = scalar_lea.hbm %s3, %s511
          %s513 = smul.u32 8, %s505
          %s514 = sshll.u32 %s498, 4
          %s515 = int_to_ptr.vmem [resolvable:$true] %s514
          %s516 = sshll.u32 %s512, 4
          %s517 = int_to_ptr.hbm [resolvable:$true] %s516
          %s518 = sshll.u32 %s513, 4
          %522 = dma.vmem_to_hbm [thread:$0]  (%p510), %s515, %s518, %s517, %s495, 128, 128, 8
        $region44: #{tpu_custom_call.1} parent=31 // pred_fallthru
          _
      $region32: #{tpu_custom_call.1} parent=5 // pred_fallthru
        _
      %p523 = scmp.le.s32.totalorder 2, %s16
      // Predicated region
      $region45: #{tpu_custom_call.1} parent=5 // pred_check
        %p524 = pneg %p523
      $region46: #{tpu_custom_call.1} parent=5 // pred_check_branch
        %526 = sbr.rel (%p524) target = $region48
      $region47: #{tpu_custom_call.1} parent=5 // pred_region
        %s527 = ssub.s32 %s16, 2
        // Predicated region
        $region49: #{tpu_custom_call.1} parent=47 // pred_check
          %p528 = pneg %p113
        $region50: #{tpu_custom_call.1} parent=47 // pred_check_branch
          %530 = sbr.rel (%p528) target = $region52
        $region51: #{tpu_custom_call.1} parent=47 // pred_region
          %s531 = sand.u32 %s98, 1
          %s532 = scalar_lea.sflag [#allocation4], %s531
          %s533 = sand.u32 %s98, 1
          %s534 = smul.addr %s533, 72
          %s535 = scalar_lea.vmem [#allocation7], %s534
          %537 = dma.done %s532, 1152
        $region52: #{tpu_custom_call.1} parent=47 // pred_fallthru
          _
      $region48: #{tpu_custom_call.1} parent=5 // pred_fallthru
        _
    $region6: #{tpu_custom_call.1} parent=1 // loop_footer
      %s20 = sadd.s32 1, %s16
    $region7: #{tpu_custom_call.1} parent=1 // loop_footer_branch
      %15 = sbr.rel target = $region3
    $region8: #{tpu_custom_call.1} parent=1 // loop_exit
      _
    %538 = vsyncpa [#allocation3], 1
    %s539 = scalar_lea.sflag [#allocation3], 1
    %540 = vsyncpa %s539, 1
    %541 = vsyncpa [#allocation6], 1
    %542 = vsyncpa [#allocation4], 1
    %s543 = scalar_lea.sflag [#allocation4], 1
    %544 = vsyncpa %s543, 1

// kernel: tpu_custom_call.1
$region0: #{tpu_custom_call.1}
  #allocation0 [shape = 'u32[]', space=smem, size = 0x4, offset = 0x4, fixed_abs, tag = 'smem constant byte address 0x4 - core index']
  #allocation1 [shape = 'u32[72,128]{1,0:T(1,128)}', space=vmem, size = 0x9000, scoped, tag = 'internal scratch']
  %s0 = inlined_call_operand.hbm [shape: f32[132,128], index: 0, kind: input, shape index: {}]
  %s1 = inlined_call_operand.hbm [shape: f32[128,128], index: 1, kind: input, shape index: {}]
  %s2 = inlined_call_operand.vmem [shape: f32[1,128], index: 2, kind: input, shape index: {}]
  %s3 = inlined_call_operand.hbm [shape: f32[132,128], index: 3, kind: output, shape index: {}]
  %s4 = sld [smem:[#allocation0]]
  $region53: #{tpu_custom_call.1} parent=0
    _
  %s6 = ssub.s32 1, %s4
  %s7 = scalar_select 0, %s6, %s4
  $region1: #{tpu_custom_call.1} parent=0
    #allocation2 [shape = 'u8[73728]{0}', space=vmem, size = 0x12000, scoped, tag = 'input window, operand 0']
    #allocation3 [shape = 's32[2]{0}', space=sflag, size = 0x8, scoped, tag = 'scoped memory for tpu_custom_call.1']
    #allocation4 [shape = 's32[2]{0}', space=sflag, size = 0x8, scoped, tag = 'scoped memory for tpu_custom_call.1']
    #allocation5 [shape = 'u8[65536]{0}', space=vmem, size = 0x10000, scoped, tag = 'input window, operand 1, single buffered']
    #allocation6 [shape = 's32[1]{0}', space=sflag, size = 0x4, scoped, tag = 'scoped memory for tpu_custom_call.1']
    #allocation7 [shape = 'u8[73728]{0}', space=vmem, size = 0x12000, scoped, tag = 'output window, operand 0']
    %8 = vsyncpa [#allocation3], 0
    %s9 = scalar_lea.sflag [#allocation3], 1
    %10 = vsyncpa %s9, 0
    %11 = vsyncpa [#allocation6], 0
    %12 = vsyncpa [#allocation4], 0
    %s13 = scalar_lea.sflag [#allocation4], 1
    %14 = vsyncpa %s13, 0
    loop: start=0, step=1, limit=4
    $region2: #{tpu_custom_call.1} parent=1 // loop_pre_header
      _
    $region3: #{tpu_custom_call.1} parent=1 // loop_header
      %s16 = sphi 0, %s20
      %p17 = scmp.ge.s32.totalorder %s16, 4
      %s26 = sphi 0, %s28
      %s29 = sphi 0, %s26
      %s30 = sphi 0, %s29
      %s46 = sphi 0, %s30
      %s50 = sphi 0, %s50
      %s52 = sphi 0, %s50
      %s53 = sphi 0, %s52
      %s67 = sphi 0, %s53
      %s71 = sphi 0, %s71
      %s73 = sphi 0, %s71
      %s74 = sphi 0, %s73
      %s88 = sphi 0, %s74
      %s94 = sphi 0, %s96
      %s97 = sphi 0, %s94
      %s98 = sphi 0, %s97
      %s114 = sphi 0, %s98
    $region4: #{tpu_custom_call.1} parent=1 // loop_header_branch
      %19 = sbr.rel (%p17) target = $region8
    $region5: #{tpu_custom_call.1} parent=1 // loop_body
      %s21 = ssub.s32 %s16, 1
      %s22 = ssub.s32 %s16, 2
      %s23 = sadd.s32 %s16, 1
      %s24 = ssub.s32 %s16, %s23
      %p25 = scmp.eq.s32.totalorder %s24, 0
      %s27 = sadd.s32 %s26, 1
      %s28 = scalar_select %p25, %s26, %s27
      %p31 = pneg %p25
      %p32 = scmp.eq.s32.totalorder %s16, 1
      %p33 = por %p31, %p32
      %p34 = scmp.ne.s32.totalorder %s26, %s29
      %p35 = scmp.eq.s32.totalorder %s16, 0
      %p36 = por %p34, %p35
      %p37 = scmp.ne.s32.totalorder %s26, %s29
      %p38 = scmp.eq.s32.totalorder %s21, 1
      %p39 = por %p37, %p38
      %p40 = scmp.ne.s32.totalorder %s29, %s30
      %p41 = scmp.eq.s32.totalorder %s21, 0
      %p42 = por %p40, %p41
      %p43 = scmp.ne.s32.totalorder %s29, %s30
      %p44 = scmp.eq.s32.totalorder %s22, 1
      %p45 = por %p43, %p44
      %p47 = scmp.ne.s32.totalorder %s30, %s46
      %p48 = scmp.eq.s32.totalorder %s22, 0
      %p49 = por %p47, %p48
      %s51 = sadd.s32 %s50, 1
      %p54 = scmp.eq.s32.totalorder %s16, 1
      %p55 = scmp.ne.s32.totalorder %s50, %s52
      %p56 = scmp.eq.s32.totalorder %s16, 0
      %p57 = por %p55, %p56
      %p58 = scmp.ne.s32.totalorder %s50, %s52
      %p59 = scmp.eq.s32.totalorder %s21, 1
      %p60 = por %p58, %p59
      %p61 = scmp.ne.s32.totalorder %s52, %s53
      %p62 = scmp.eq.s32.totalorder %s21, 0
      %p63 = por %p61, %p62
      %p64 = scmp.ne.s32.totalorder %s52, %s53
      %p65 = scmp.eq.s32.totalorder %s22, 1
      %p66 = por %p64, %p65
      %p68 = scmp.ne.s32.totalorder %s53, %s67
      %p69 = scmp.eq.s32.totalorder %s22, 0
      %p70 = por %p68, %p69
      %s72 = sadd.s32 %s71, 1
      %p75 = scmp.eq.s32.totalorder %s16, 1
      %p76 = scmp.ne.s32.totalorder %s71, %s73
      %p77 = scmp.eq.s32.totalorder %s16, 0
      %p78 = por %p76, %p77
      %p79 = scmp.ne.s32.totalorder %s71, %s73
      %p80 = scmp.eq.s32.totalorder %s21, 1
      %p81 = por %p79, %p80
      %p82 = scmp.ne.s32.totalorder %s73, %s74
      %p83 = scmp.eq.s32.totalorder %s21, 0
      %p84 = por %p82, %p83
      %p85 = scmp.ne.s32.totalorder %s73, %s74
      %p86 = scmp.eq.s32.totalorder %s22, 1
      %p87 = por %p85, %p86
      %p89 = scmp.ne.s32.totalorder %s74, %s88
      %p90 = scmp.eq.s32.totalorder %s22, 0
      %p91 = por %p89, %p90
      %s92 = ssub.s32 %s16, %s23
      %p93 = scmp.eq.s32.totalorder %s92, 0
      %s95 = sadd.s32 %s94, 1
      %s96 = scalar_select %p93, %s94, %s95
      %p99 = pneg %p93
      %p100 = scmp.eq.s32.totalorder %s16, 1
      %p101 = por %p99, %p100
      %p102 = scmp.ne.s32.totalorder %s94, %s97
      %p103 = scmp.eq.s32.totalorder %s16, 0
      %p104 = por %p102, %p103
      %p105 = scmp.ne.s32.totalorder %s94, %s97
      %p106 = scmp.eq.s32.totalorder %s21, 1
      %p107 = por %p105, %p106
      %p108 = scmp.ne.s32.totalorder %s97, %s98
      %p109 = scmp.eq.s32.totalorder %s21, 0
      %p110 = por %p108, %p109
      %p111 = scmp.ne.s32.totalorder %s97, %s98
      %p112 = scmp.eq.s32.totalorder %s22, 1
      %p113 = por %p111, %p112
      %p115 = scmp.ne.s32.totalorder %s98, %s114
      %p116 = scmp.eq.s32.totalorder %s22, 0
      %p117 = por %p115, %p116
      %p118 = scmp.le.s32.totalorder 1, %s16
      %p119 = scmp.lt.s32.totalorder %s16, 3
      %p120 = pnand %p118, %p119
      %p121 = pneg %p120
      // Predicated region
      $region9: #{tpu_custom_call.1} parent=5 // pred_check
        _
      $region10: #{tpu_custom_call.1} parent=5 // pred_check_branch
        %123 = sbr.rel (%p120) target = $region12
      $region11: #{tpu_custom_call.1} parent=5 // pred_region
        %s124 = ssub.s32 %s16, 1
        // Predicated region
        $region13: #{tpu_custom_call.1} parent=11 // pred_check
          %p125 = pneg %p63
        $region14: #{tpu_custom_call.1} parent=11 // pred_check_branch
          %127 = sbr.rel (%p125) target = $region16
        $region15: #{tpu_custom_call.1} parent=11 // pred_region
          %129 = vsyncadd [#allocation6], 0
          %s130 = sshll.u32 %s1, 4
          %s131 = int_to_ptr.hbm [resolvable:$true] %s130
          %s132 = sshll.u32 [#allocation5], 4
          %s133 = int_to_ptr.vmem [resolvable:$true] %s132
          %138 = dma.hbm_to_vmem [thread:$0]  %s131, 2048, %s133, [#allocation6], 128, 128, 8
        $region16: #{tpu_custom_call.1} parent=11 // pred_fallthru
          _
        // Predicated region
        $region17: #{tpu_custom_call.1} parent=11 // pred_check
          %p139 = pneg %p84
        $region18: #{tpu_custom_call.1} parent=11 // pred_check_branch
          %141 = sbr.rel (%p139) target = $region20
        $region19: #{tpu_custom_call.1} parent=11 // pred_region
          _
        $region20: #{tpu_custom_call.1} parent=11 // pred_fallthru
          _
      $region12: #{tpu_custom_call.1} parent=5 // pred_fallthru
        _
      %p142 = scmp.lt.s32.totalorder %s16, 2
      // Predicated region
      $region21: #{tpu_custom_call.1} parent=5 // pred_check
        %p143 = pneg %p142
      $region22: #{tpu_custom_call.1} parent=5 // pred_check_branch
        %145 = sbr.rel (%p143) target = $region24
      $region23: #{tpu_custom_call.1} parent=5 // pred_region
        // Predicated region
        $region25: #{tpu_custom_call.1} parent=23 // pred_check
          %p146 = pneg %p36
        $region26: #{tpu_custom_call.1} parent=23 // pred_check_branch
          %148 = sbr.rel (%p146) target = $region28
        $region27: #{tpu_custom_call.1} parent=23 // pred_region
          %s149 = sand.u32 %s26, 1
          %s150 = scalar_lea.sflag [#allocation3], %s149
          %s151 = sand.u32 %s26, 1
          %s152 = smul.addr %s151, 72
          %s153 = scalar_lea.vmem [#allocation2], %s152
          %s154 = smul.u32 9, %s16
          %s155 = ssub.s32 17, %s154
          %p156 = scmp.lt.s32.totalorder %s155, 9
          %s157 = scalar_select %p156, %s155, 9
          %s158 = smul.u32 8, %s157
          %s159 = ssub.s32 72, %s158
          %s160 = sshll.u32 %s159, 4
          %161 = vsyncadd %s150, %s160
          %p162 = scmp.ne.s32.totalorder 0, %s158
          %s163 = smul.addr %s154, 8
          %s164 = scalar_lea.hbm %s0, %s163
          %s165 = smul.u32 8, %s157
          %s166 = sshll.u32 %s164, 4
          %s167 = int_to_ptr.hbm [resolvable:$true] %s166
          %s168 = sshll.u32 %s153, 4
          %s169 = int_to_ptr.vmem [resolvable:$true] %s168
          %s170 = sshll.u32 %s165, 4
          %174 = dma.hbm_to_vmem [thread:$0]  (%p162), %s167, %s170, %s169, %s150, 128, 128, 8
        $region28: #{tpu_custom_call.1} parent=23 // pred_fallthru
          _
      $region24: #{tpu_custom_call.1} parent=5 // pred_fallthru
        _
      %p175 = scmp.le.s32.totalorder 1, %s16
      %p176 = scmp.lt.s32.totalorder %s16, 3
      %p177 = pnand %p175, %p176
      %p178 = pneg %p177
      // Predicated region
      $region29: #{tpu_custom_call.1} parent=5 // pred_check
        _
      $region30: #{tpu_custom_call.1} parent=5 // pred_check_branch
        %180 = sbr.rel (%p177) target = $region32
      $region31: #{tpu_custom_call.1} parent=5 // pred_region
        %s181 = ssub.s32 %s16, 1
        %s182 = sand.u32 %s29, 1
        %s183 = scalar_lea.sflag [#allocation3], %s182
        %s184 = sand.u32 %s29, 1
        %s185 = smul.addr %s184, 72
        %s186 = scalar_lea.vmem [#allocation2], %s185
        // Predicated region
        $region33: #{tpu_custom_call.1} parent=31 // pred_check
          %p187 = pneg %p42
        $region34: #{tpu_custom_call.1} parent=31 // pred_check_branch
          %189 = sbr.rel (%p187) target = $region36
        $region35: #{tpu_custom_call.1} parent=31 // pred_region
          %191 = dma.done %s183, 1152
        $region36: #{tpu_custom_call.1} parent=31 // pred_fallthru
          _
        // Predicated region
        $region37: #{tpu_custom_call.1} parent=31 // pred_check
          %p192 = pneg %p63
        $region38: #{tpu_custom_call.1} parent=31 // pred_check_branch
          %194 = sbr.rel (%p192) target = $region40
        $region39: #{tpu_custom_call.1} parent=31 // pred_region
          %196 = dma.done [#allocation6], 2048
        $region40: #{tpu_custom_call.1} parent=31 // pred_fallthru
          _
        %s197 = sand.u32 %s29, 1
        %s198 = scalar_lea.sflag [#allocation3], %s197
        %s199 = sand.u32 %s29, 1
        %s200 = smul.addr %s199, 72
        %s201 = scalar_lea.vmem [#allocation2], %s200
        %p202 = pneg %p42
        %p203 = pneg %p39
        %p204 = pneg %p63
        %p205 = pneg %p60
        %p206 = pneg %p84
        %p207 = pneg %p81
        %p208 = pneg %p110
        %p209 = pneg %p107
        %s210 = sand.u32 %s97, 1
        %s211 = scalar_lea.sflag [#allocation4], %s210
        %s212 = sand.u32 %s97, 1
        %s213 = smul.addr %s212, 72
        %s214 = scalar_lea.vmem [#allocation7], %s213
        %s215 = smul.u32 9, %s21
        %s216 = ssub.s32 17, %s215
        %p217 = scmp.lt.s32.totalorder %s216, 9
        %s218 = scalar_select %p217, %s216, 9
        %s219 = smul.u32 8, %s218
        %s220 = smul.u32 9, %s21
        %s221 = ssub.s32 17, %s220
        %p222 = scmp.lt.s32.totalorder %s221, 9
        %s223 = scalar_select %p222, %s221, 9
        %s224 = smul.u32 8, %s223
        %v225 = vld [vmem:[%s186] sm:$0xff]
        %v226 = vld [vmem:[%s186 + $0x8] sm:$0xff]
        %v227 = vld [vmem:[%s186 + $0x10] sm:$0xff]
        %v228 = vld [vmem:[%s186 + $0x18] sm:$0xff]
        %v229 = vld [vmem:[%s186 + $0x20] sm:$0xff]
        %v230 = vld [vmem:[%s186 + $0x28] sm:$0xff]
        %v231 = vld [vmem:[%s186 + $0x30] sm:$0xff]
        %v232 = vld [vmem:[%s186 + $0x38] sm:$0xff]
        %v233 = vld [vmem:[%s186 + $0x40] sm:$0xff]
        %234 = vadd.xlane.f32.xlu0 %v225
        %v235 = vpop.xlane.xlu0 %234
        %236 = vadd.xlane.f32.xlu0 %v226
        %v237 = vpop.xlane.xlu0 %236
        %238 = vadd.xlane.f32.xlu0 %v227
        %v239 = vpop.xlane.xlu0 %238
        %240 = vadd.xlane.f32.xlu0 %v228
        %v241 = vpop.xlane.xlu0 %240
        %242 = vadd.xlane.f32.xlu0 %v229
        %v243 = vpop.xlane.xlu0 %242
        %244 = vadd.xlane.f32.xlu0 %v230
        %v245 = vpop.xlane.xlu0 %244
        %246 = vadd.xlane.f32.xlu0 %v231
        %v247 = vpop.xlane.xlu0 %246
        %248 = vadd.xlane.f32.xlu0 %v232
        %v249 = vpop.xlane.xlu0 %248
        %250 = vadd.xlane.f32.xlu0 %v233
        %v251 = vpop.xlane.xlu0 %250
        %v252 = vrcp.pop 128.0
        %v253 = vmul.f32 128.0, %v252
        %v254 = vsub.f32 1.0, %v253
        %v255 = vmul.f32 %v252, %v254
        %v256 = vadd.f32 %v252, %v255
        %vm257 = vweird.f32 %v252
        %v258 = vsel %vm257, %v252, %v256
        %v259 = vmul.f32 %v235, %v258
        %v260 = vmul.f32 %v237, %v258
        %v261 = vmul.f32 %v239, %v258
        %v262 = vmul.f32 %v241, %v258
        %v263 = vmul.f32 %v243, %v258
        %v264 = vmul.f32 %v245, %v258
        %v265 = vmul.f32 %v247, %v258
        %v266 = vmul.f32 %v249, %v258
        %v267 = vmul.f32 %v251, %v258
        %v268 = vsub.f32 %v225, %v259
        %v269 = vsub.f32 %v226, %v260
        %v270 = vsub.f32 %v227, %v261
        %v271 = vsub.f32 %v228, %v262
        %v272 = vsub.f32 %v229, %v263
        %v273 = vsub.f32 %v230, %v264
        %v274 = vsub.f32 %v231, %v265
        %v275 = vsub.f32 %v232, %v266
        %v276 = vsub.f32 %v233, %v267
        %v277 = vmul.f32 %v268, %v268
        %v278 = vmul.f32 %v269, %v269
        %v279 = vmul.f32 %v270, %v270
        %v280 = vmul.f32 %v271, %v271
        %v281 = vmul.f32 %v272, %v272
        %v282 = vmul.f32 %v273, %v273
        %v283 = vmul.f32 %v274, %v274
        %v284 = vmul.f32 %v275, %v275
        %v285 = vmul.f32 %v276, %v276
        %286 = vadd.xlane.f32.xlu0 %v277
        %v287 = vpop.xlane.xlu0 %286
        %288 = vadd.xlane.f32.xlu0 %v278
        %v289 = vpop.xlane.xlu0 %288
        %290 = vadd.xlane.f32.xlu0 %v279
        %v291 = vpop.xlane.xlu0 %290
        %292 = vadd.xlane.f32.xlu0 %v280
        %v293 = vpop.xlane.xlu0 %292
        %294 = vadd.xlane.f32.xlu0 %v281
        %v295 = vpop.xlane.xlu0 %294
        %296 = vadd.xlane.f32.xlu0 %v282
        %v297 = vpop.xlane.xlu0 %296
        %298 = vadd.xlane.f32.xlu0 %v283
        %v299 = vpop.xlane.xlu0 %298
        %300 = vadd.xlane.f32.xlu0 %v284
        %v301 = vpop.xlane.xlu0 %300
        %302 = vadd.xlane.f32.xlu0 %v285
        %v303 = vpop.xlane.xlu0 %302
        %v304 = vmul.f32 %v287, %v258
        %v305 = vmul.f32 %v289, %v258
        %v306 = vmul.f32 %v291, %v258
        %v307 = vmul.f32 %v293, %v258
        %v308 = vmul.f32 %v295, %v258
        %v309 = vmul.f32 %v297, %v258
        %v310 = vmul.f32 %v299, %v258
        %v311 = vmul.f32 %v301, %v258
        %v312 = vmul.f32 %v303, %v258
        %v313 = vadd.f32 %v304, 1e-05
        %v314 = vadd.f32 %v305, 1e-05
        %v315 = vadd.f32 %v306, 1e-05
        %v316 = vadd.f32 %v307, 1e-05
        %v317 = vadd.f32 %v308, 1e-05
        %v318 = vadd.f32 %v309, 1e-05
        %v319 = vadd.f32 %v310, 1e-05
        %v320 = vadd.f32 %v311, 1e-05
        %v321 = vadd.f32 %v312, 1e-05
        %v322 = vrsqrt.pop %v313
        %v323 = vmul.f32 %v322, %v313
        %v324 = vmul.f32 %v323, %v322
        %v325 = vmul.f32 0.5, %v324
        %v326 = vsub.f32 1.5, %v325
        %v327 = vmul.f32 %v322, %v326
        %vm328 = vweird.f32 %v313
        %vm329 = vweird.f32 %v322
        %vm330 = vmor %vm328, %vm329
        %v331 = vsel %vm330, %v322, %v327
        %v332 = vrsqrt.pop %v314
        %v333 = vmul.f32 %v332, %v314
        %v334 = vmul.f32 %v333, %v332
        %v335 = vmul.f32 0.5, %v334
        %v336 = vsub.f32 1.5, %v335
        %v337 = vmul.f32 %v332, %v336
        %vm338 = vweird.f32 %v314
        %vm339 = vweird.f32 %v332
        %vm340 = vmor %vm338, %vm339
        %v341 = vsel %vm340, %v332, %v337
        %v342 = vrsqrt.pop %v315
        %v343 = vmul.f32 %v342, %v315
        %v344 = vmul.f32 %v343, %v342
        %v345 = vmul.f32 0.5, %v344
        %v346 = vsub.f32 1.5, %v345
        %v347 = vmul.f32 %v342, %v346
        %vm348 = vweird.f32 %v315
        %vm349 = vweird.f32 %v342
        %vm350 = vmor %vm348, %vm349
        %v351 = vsel %vm350, %v342, %v347
        %v352 = vrsqrt.pop %v316
        %v353 = vmul.f32 %v352, %v316
        %v354 = vmul.f32 %v353, %v352
        %v355 = vmul.f32 0.5, %v354
        %v356 = vsub.f32 1.5, %v355
        %v357 = vmul.f32 %v352, %v356
        %vm358 = vweird.f32 %v316
        %vm359 = vweird.f32 %v352
        %vm360 = vmor %vm358, %vm359
        %v361 = vsel %vm360, %v352, %v357
        %v362 = vrsqrt.pop %v317
        %v363 = vmul.f32 %v362, %v317
        %v364 = vmul.f32 %v363, %v362
        %v365 = vmul.f32 0.5, %v364
        %v366 = vsub.f32 1.5, %v365
        %v367 = vmul.f32 %v362, %v366
        %vm368 = vweird.f32 %v317
        %vm369 = vweird.f32 %v362
        %vm370 = vmor %vm368, %vm369
        %v371 = vsel %vm370, %v362, %v367
        %v372 = vrsqrt.pop %v318
        %v373 = vmul.f32 %v372, %v318
        %v374 = vmul.f32 %v373, %v372
        %v375 = vmul.f32 0.5, %v374
        %v376 = vsub.f32 1.5, %v375
        %v377 = vmul.f32 %v372, %v376
        %vm378 = vweird.f32 %v318
        %vm379 = vweird.f32 %v372
        %vm380 = vmor %vm378, %vm379
        %v381 = vsel %vm380, %v372, %v377
        %v382 = vrsqrt.pop %v319
        %v383 = vmul.f32 %v382, %v319
        %v384 = vmul.f32 %v383, %v382
        %v385 = vmul.f32 0.5, %v384
        %v386 = vsub.f32 1.5, %v385
        %v387 = vmul.f32 %v382, %v386
        %vm388 = vweird.f32 %v319
        %vm389 = vweird.f32 %v382
        %vm390 = vmor %vm388, %vm389
        %v391 = vsel %vm390, %v382, %v387
        %v392 = vrsqrt.pop %v320
        %v393 = vmul.f32 %v392, %v320
        %v394 = vmul.f32 %v393, %v392
        %v395 = vmul.f32 0.5, %v394
        %v396 = vsub.f32 1.5, %v395
        %v397 = vmul.f32 %v392, %v396
        %vm398 = vweird.f32 %v320
        %vm399 = vweird.f32 %v392
        %vm400 = vmor %vm398, %vm399
        %v401 = vsel %vm400, %v392, %v397
        %v402 = vrsqrt.pop %v321
        %v403 = vmul.f32 %v402, %v321
        %v404 = vmul.f32 %v403, %v402
        %v405 = vmul.f32 0.5, %v404
        %v406 = vsub.f32 1.5, %v405
        %v407 = vmul.f32 %v402, %v406
        %vm408 = vweird.f32 %v321
        %vm409 = vweird.f32 %v402
        %vm410 = vmor %vm408, %vm409
        %v411 = vsel %vm410, %v402, %v407
        %v412 = vmul.f32 %v268, %v331
        %v413 = vmul.f32 %v269, %v341
        %v414 = vmul.f32 %v270, %v351
        %v415 = vmul.f32 %v271, %v361
        %v416 = vmul.f32 %v272, %v371
        %v417 = vmul.f32 %v273, %v381
        %v418 = vmul.f32 %v274, %v391
        %v419 = vmul.f32 %v275, %v401
        %v420 = vmul.f32 %v276, %v411
        %v421 = vld [vmem:[#allocation5] sm:$0xff]
        %v422 = vld [vmem:[#allocation5 + $0x8] sm:$0xff]
        %v423 = vld [vmem:[#allocation5 + $0x10] sm:$0xff]
        %v424 = vld [vmem:[#allocation5 + $0x18] sm:$0xff]
        %v425 = vld [vmem:[#allocation5 + $0x20] sm:$0xff]
        %v426 = vld [vmem:[#allocation5 + $0x28] sm:$0xff]
        %v427 = vld [vmem:[#allocation5 + $0x30] sm:$0xff]
        %v428 = vld [vmem:[#allocation5 + $0x38] sm:$0xff]
        %v429 = vld [vmem:[#allocation5 + $0x40] sm:$0xff]
        %v430 = vld [vmem:[#allocation5 + $0x48] sm:$0xff]
        %v431 = vld [vmem:[#allocation5 + $0x50] sm:$0xff]
        %v432 = vld [vmem:[#allocation5 + $0x58] sm:$0xff]
        %v433 = vld [vmem:[#allocation5 + $0x60] sm:$0xff]
        %v434 = vld [vmem:[#allocation5 + $0x68] sm:$0xff]
        %v435 = vld [vmem:[#allocation5 + $0x70] sm:$0xff]
        %v436 = vld [vmem:[#allocation5 + $0x78] sm:$0xff]
        %v437 = vld [vmem:[%s2] sm:$0x1]
        %v439 = vperm.slane %v437, 0
        %441 = vmatpush.msra.mxu0 %v436
        %442 = vmatpush.msra.mxu0 %v435
        %443 = vmatpush.msra.mxu0 %v434
        %444 = vmatpush.msra.mxu0 %v433
        %445 = vmatpush.msra.mxu0 %v432
        %446 = vmatpush.msra.mxu0 %v431
        %447 = vmatpush.msra.mxu0 %v430
        %448 = vmatpush.msra.mxu0 %v429
        %449 = vmatpush.msra.mxu0 %v428
        %450 = vmatpush.msra.mxu0 %v427
        %451 = vmatpush.msra.mxu0 %v426
        %452 = vmatpush.msra.mxu0 %v425
        %453 = vmatpush.msra.mxu0 %v424
        %454 = vmatpush.msra.mxu0 %v423
        %455 = vmatpush.msra.mxu0 %v422
        %456 = vmatpush.msra.mxu0 %v421
        %457 = vmatmul.f32.gmra.mxu0 %v412
        %v458 = vpop.f32.mrf.mxu0
        %v459 = vadd.f32 %v439, %v458
        %460 = vmatmul.f32.gmra.mxu0 %v413
        %v461 = vpop.f32.mrf.mxu0
        %v462 = vadd.f32 %v439, %v461
        %463 = vmatmul.f32.gmra.mxu0 %v414
        %v464 = vpop.f32.mrf.mxu0
        %v465 = vadd.f32 %v439, %v464
        %466 = vmatmul.f32.gmra.mxu0 %v415
        %v467 = vpop.f32.mrf.mxu0
        %v468 = vadd.f32 %v439, %v467
        %469 = vmatmul.f32.gmra.mxu0 %v416
        %v470 = vpop.f32.mrf.mxu0
        %v471 = vadd.f32 %v439, %v470
        %472 = vmatmul.f32.gmra.mxu0 %v417
        %v473 = vpop.f32.mrf.mxu0
        %v474 = vadd.f32 %v439, %v473
        %475 = vmatmul.f32.gmra.mxu0 %v418
        %v476 = vpop.f32.mrf.mxu0
        %v477 = vadd.f32 %v439, %v476
        %478 = vmatmul.f32.gmra.mxu0 %v419
        %v479 = vpop.f32.mrf.mxu0
        %v480 = vadd.f32 %v439, %v479
        %481 = vmatmul.f32.gmra.mxu0 %v420
        %v482 = vpop.f32.mrf.mxu0
        %v483 = vadd.f32 %v439, %v482
        %484 = vdwg.mxu0
        %485 = vst [vmem:[%s214] sm:$0xff] %v459
        %486 = vst [vmem:[%s214 + $0x8] sm:$0xff] %v462
        %487 = vst [vmem:[%s214 + $0x10] sm:$0xff] %v465
        %488 = vst [vmem:[%s214 + $0x18] sm:$0xff] %v468
        %489 = vst [vmem:[%s214 + $0x20] sm:$0xff] %v471
        %490 = vst [vmem:[%s214 + $0x28] sm:$0xff] %v474
        %491 = vst [vmem:[%s214 + $0x30] sm:$0xff] %v477
        %492 = vst [vmem:[%s214 + $0x38] sm:$0xff] %v480
        %493 = vst [vmem:[%s214 + $0x40] sm:$0xff] %v483
        %s494 = sand.u32 %s97, 1
        %s495 = scalar_lea.sflag [#allocation4], %s494
        %s496 = sand.u32 %s97, 1
        %s497 = smul.addr %s496, 72
        %s498 = scalar_lea.vmem [#allocation7], %s497
        // Predicated region
        $region41: #{tpu_custom_call.1} parent=31 // pred_check
          %p499 = pneg %p107
        $region42: #{tpu_custom_call.1} parent=31 // pred_check_branch
          %501 = sbr.rel (%p499) target = $region44
        $region43: #{tpu_custom_call.1} parent=31 // pred_region
          %s502 = smul.u32 9, %s21
          %s503 = ssub.s32 17, %s502
          %p504 = scmp.lt.s32.totalorder %s503, 9
          %s505 = scalar_select %p504, %s503, 9
          %s506 = smul.u32 8, %s505
          %s507 = ssub.s32 72, %s506
          %s508 = sshll.u32 %s507, 4
          %509 = vsyncadd %s495, %s508
          %p510 = scmp.ne.s32.totalorder 0, %s506
          %s511 = smul.addr %s502, 8
          %s512 = scalar_lea.hbm %s3, %s511
          %s513 = smul.u32 8, %s505
          %s514 = sshll.u32 %s498, 4
          %s515 = int_to_ptr.vmem [resolvable:$true] %s514
          %s516 = sshll.u32 %s512, 4
          %s517 = int_to_ptr.hbm [resolvable:$true] %s516
          %s518 = sshll.u32 %s513, 4
          %522 = dma.vmem_to_hbm [thread:$0]  (%p510), %s515, %s518, %s517, %s495, 128, 128, 8
        $region44: #{tpu_custom_call.1} parent=31 // pred_fallthru
          _
      $region32: #{tpu_custom_call.1} parent=5 // pred_fallthru
        _
      %p523 = scmp.le.s32.totalorder 2, %s16
      // Predicated region
      $region45: #{tpu_custom_call.1} parent=5 // pred_check
        %p524 = pneg %p523
      $region46: #{tpu_custom_call.1} parent=5 // pred_check_branch
        %526 = sbr.rel (%p524) target = $region48
      $region47: #{tpu_custom_call.1} parent=5 // pred_region
        %s527 = ssub.s32 %s16, 2
        // Predicated region
        $region49: #{tpu_custom_call.1} parent=47 // pred_check
          %p528 = pneg %p113
        $region50: #{tpu_custom_call.1} parent=47 // pred_check_branch
          %530 = sbr.rel (%p528) target = $region52
        $region51: #{tpu_custom_call.1} parent=47 // pred_region
          %s531 = sand.u32 %s98, 1
          %s532 = scalar_lea.sflag [#allocation4], %s531
          %s533 = sand.u32 %s98, 1
          %s534 = smul.addr %s533, 72
          %s535 = scalar_lea.vmem [#allocation7], %s534
          %537 = dma.done %s532, 1152
        $region52: #{tpu_custom_call.1} parent=47 // pred_fallthru
          _
      $region48: #{tpu_custom_call.1} parent=5 // pred_fallthru
        _
    $region6: #{tpu_custom_call.1} parent=1 // loop_footer
      %s20 = sadd.s32 1, %s16
    $region7: #{tpu_custom_call.1} parent=1 // loop_footer_branch
      %15 = sbr.rel target = $region3
    $region8: #{tpu_custom_call.1} parent=1 // loop_exit
      _
    %538 = vsyncpa [#allocation3], 1
    %s539 = scalar_lea.sflag [#allocation3], 1
    %540 = vsyncpa %s539, 1
    %541 = vsyncpa [#allocation6], 1
    %542 = vsyncpa [#allocation4], 1
    %s543 = scalar_lea.sflag [#allocation4], 1
    %544 = vsyncpa %s543, 1

</llo_original>
